<compile_context>
chip_gen: v7x
topology: tpu7x:2x2x1
jax: 0.10.0
libtpu: 0.0.40
codegen_flags: <defaults>
</compile_context>

<pallas_src>
import functools

import jax
import jax.numpy as jnp
from jax.experimental import pallas as pl
from jax.experimental.pallas import tpu as pltpu

LABEL_SMOOTHING = 0.1
NUM_CLASSES = 2
LANES = 128  # lane-dense output width: cols [0,2) = logits, col 2 = per-example loss


def _round_up(a, m):
    return ((a + m - 1) // m) * m


def _bf16_activations():
    """bf16 VPU/EUP exists on v6e/v7x; v5e and older have no bf16 vector math."""
    try:
        kind = jax.devices()[0].device_kind.lower()
    except Exception:  # pragma: no cover - defensive
        return False
    if any(old in kind for old in ("v2", "v3", "v4", "v5")):
        return False
    return ("v6" in kind) or ("v7" in kind)


def _head_loss_kernel(x_ref, lab_ref, w1_ref, b1_ref, w2_ref, b2_ref, out_ref,
                      *, bf16_act):
    """One batch tile of the classification head + label-smoothed cross-entropy.

    x_ref   : (TB, 2H)  bf16   CLS pair features
    lab_ref : (TB, 1)   int32  labels
    w1_ref  : (2H, H)   bf16   dense weight, stored (in, out) = torch W.T
    b1_ref  : (1, H)    f32
    w2_ref  : (H, 128)  bf16   out_proj weight, zero-padded past column 2
    b2_ref  : (1, 128)  f32    out_proj bias,   zero-padded past column 2
    out_ref : (TB, 128) f32    cols [0,2) = logits, col 2 = per-example loss
    """
    # dense (MXU, f32 accumulate) -> tanh   (dropout == identity in eval mode)
    pre = (jnp.dot(x_ref[...], w1_ref[...], preferred_element_type=jnp.float32)
           + b1_ref[...])
    if bf16_act:
        # v6e/v7x: bf16 EUP tanh, result already bf16 for the second MXU op.
        h = jnp.tanh(pre.astype(jnp.bfloat16))
    else:
        # v5e: f32 tanh, cast once for the MXU.
        h = jnp.tanh(pre).astype(w2_ref.dtype)

    # out_proj against the lane-dense zero-padded weight -> (TB, 128) logits slab.
    # Lanes >= NUM_CLASSES are exactly zero (zero-padded w2/b2).
    logits_pad = (jnp.dot(h, w2_ref[...], preferred_element_type=jnp.float32)
                  + b2_ref[...])

    col = jax.lax.broadcasted_iota(jnp.int32, logits_pad.shape, 1)
    valid = col < NUM_CLASSES

    # 2-class closed-form log-softmax (no 128-lane max/sum-exp reductions).
    # Because every lane >= 2 of logits_pad is exactly zero, summing the two
    # opposite lane rotations places l1 at lane 0 and l0 at lane 1 regardless
    # of the roll direction convention.
    pair = (pltpu.roll(logits_pad, shift=1, axis=1)
            + pltpu.roll(logits_pad, shift=LANES - 1, axis=1))
    mx = jnp.maximum(logits_pad, pair)
    lse = mx + jnp.log(1.0 + jnp.exp(-jnp.abs(logits_pad - pair)))
    logp = logits_pad - lse  # correct at lanes 0,1; finite garbage elsewhere

    # PyTorch CrossEntropyLoss(label_smoothing=eps):  q = (1-eps)*onehot + eps/C
    eps = jnp.float32(LABEL_SMOOTHING)
    onehot = (col == lab_ref[...]).astype(jnp.float32)
    q = jnp.where(valid, (1.0 - eps) * onehot + eps / NUM_CLASSES, 0.0)
    per_ex = -jnp.sum(q * logp, axis=-1, keepdims=True)  # (TB, 1)

    # pack logits + per-example loss into a single unmasked lane-dense store
    out = jnp.where(valid, logits_pad,
                    jnp.where(col == NUM_CLASSES, per_ex, 0.0))
    out_ref[...] = out.astype(out_ref.dtype)


def _vmem_limit_bytes(tile_b, hidden):
    two_h = 2 * hidden
    bf16, f32 = 2, 4
    tiled = (tile_b * two_h * bf16        # x block
             + tile_b * LANES * f32       # labels block (lane-padded in VMEM)
             + tile_b * LANES * f32)      # output block
    resident = (two_h * hidden * bf16     # w1
                + 8 * hidden * f32        # b1 (sublane-padded)
                + hidden * LANES * bf16   # w2 (lane-padded)
                + 8 * LANES * f32)        # b2
    # 2x for double-buffering, intermediates (pre/h/logits slab), headroom.
    est = (2 * (tiled + resident)
           + 3 * tile_b * max(hidden, LANES) * f32
           + (4 << 20))
    try:
        cap = int(pltpu.get_tpu_info().vmem_capacity_bytes)
    except Exception:  # pragma: no cover - defensive
        cap = 64 << 20  # v7x physical VMEM; safe lower bound for newer chips
    return int(min(est, (cap * 7) // 8))


def _choose_tiling(batch):
    """Pick (tile_b, padded_batch).

    Target ~512-1024 rows per grid step to amortize the ~0.35us per-step
    pipeline overhead, keep >=2 steps once batch >= 512 (v7x megacore), and
    choose a divisor-friendly multiple-of-16 tile to avoid padded-row waste.
    """
    if batch >= 1024:
        n_tiles = max(2, -(-batch // 1024))
    elif batch >= 2 * 256:
        n_tiles = 2
    else:
        n_tiles = 1
    tile_b = _round_up(-(-max(batch, 1) // n_tiles), 16)
    return tile_b, tile_b * n_tiles


def classifier_head_with_loss(x, labels, w1, b1, w2_pad, b2_pad, *,
                              tile_b, bf16_act):
    """x: (Bp, 2H) bf16, labels: (Bp, 1) int32 -> (Bp, 128) f32 packed output."""
    b_pad, two_h = x.shape
    hidden = w1.shape[1]
    grid = (b_pad // tile_b,)

    kernel = functools.partial(_head_loss_kernel, bf16_act=bf16_act)
    return pl.pallas_call(
        kernel,
        out_shape=jax.ShapeDtypeStruct((b_pad, LANES), jnp.float32),
        grid_spec=pltpu.PrefetchScalarGridSpec(
            num_scalar_prefetch=0,
            grid=grid,
            in_specs=[
                pl.BlockSpec((tile_b, two_h), lambda i: (i, 0)),   # x: tiled over B
                pl.BlockSpec((tile_b, 1), lambda i: (i, 0)),       # labels: tiled
                pl.BlockSpec((two_h, hidden), lambda i: (0, 0)),   # w1 resident
                pl.BlockSpec((1, hidden), lambda i: (0, 0)),       # b1 resident
                pl.BlockSpec((hidden, LANES), lambda i: (0, 0)),   # w2 resident
                pl.BlockSpec((1, LANES), lambda i: (0, 0)),        # b2 resident
            ],
            out_specs=pl.BlockSpec((tile_b, LANES), lambda i: (i, 0)),
        ),
        compiler_params=pltpu.CompilerParams(
            dimension_semantics=("parallel",),  # independent batch tiles -> megacore
            vmem_limit_bytes=_vmem_limit_bytes(tile_b, hidden),
        ),
    )(x, labels, w1, b1, w2_pad, b2_pad)


def model_forward(features, labels, params):
    """Mirrors Model.forward after the external encoder call.

    features: (2*B, S, H) encoder output (outputs[0] in the torch code)
    labels:   (B, 1) int
    Returns (loss, prob); prob == logits, matching `prob = torch.tensor(logits)`.
    """
    hidden = params["w1"].shape[1]
    batch = features.shape[0] // 2
    bf16_act = _bf16_activations()

    # RobertaClassificationHead glue: CLS slice + pair-concat reshape (pure
    # layout; XLA fuses the strided slice with the bf16 cast).
    cls = features[:, 0, :]
    x = cls.reshape(batch, 2 * hidden).astype(jnp.bfloat16)
    labels_i32 = labels.reshape(-1, 1).astype(jnp.int32)

    tile_b, b_pad = _choose_tiling(batch)
    if b_pad != batch:
        x = jnp.pad(x, ((0, b_pad - batch), (0, 0)))
        labels_i32 = jnp.pad(labels_i32, ((0, b_pad - batch), (0, 0)))

    out = classifier_head_with_loss(
        x, labels_i32, params["w1"], params["b1"],
        params["w2_pad"], params["b2_pad"],
        tile_b=tile_b, bf16_act=bf16_act,
    )

    logits = out[:batch, :NUM_CLASSES]
    loss = jnp.sum(out[:batch, NUM_CLASSES]) / batch  # mean over the real batch
    prob = logits                                     # torch.tensor(logits) is a copy
    return loss, prob


def init_params(key, hidden_size):
    k1, k2, k3, k4 = jax.random.split(key, 4)
    # Weights stored as (in_features, out_features) == torch weight transposed,
    # in bf16 (halves weight DMA, doubles MXU rate); biases kept in f32.
    # out_proj weight/bias are zero-padded to 128 lanes once, here (hoisted
    # out of the forward path).
    w1 = (jax.random.normal(k1, (2 * hidden_size, hidden_size), jnp.float32)
          * 0.02).astype(jnp.bfloat16)
    b1 = jax.random.normal(k2, (1, hidden_size), jnp.float32) * 0.02
    w2 = (jax.random.normal(k3, (hidden_size, NUM_CLASSES), jnp.float32)
          * 0.02).astype(jnp.bfloat16)
    b2 = jax.random.normal(k4, (1, NUM_CLASSES), jnp.float32) * 0.02
    w2_pad = jnp.pad(w2, ((0, 0), (0, LANES - NUM_CLASSES)))
    b2_pad = jnp.pad(b2, ((0, 0), (0, LANES - NUM_CLASSES)))
    return {"w1": w1, "b1": b1, "w2_pad": w2_pad, "b2_pad": b2_pad}


def _reference(features, labels, params, *, bf16_act):
    """Pure-JAX reference (same bf16 rounding points as the kernel)."""
    hidden = params["w1"].shape[1]
    cls = features[:, 0, :]
    x = cls.reshape(-1, 2 * hidden).astype(jnp.bfloat16).astype(jnp.float32)
    w1 = params["w1"].astype(jnp.float32)
    w2 = params["w2_pad"][:, :NUM_CLASSES].astype(jnp.float32)
    b2 = params["b2_pad"][:, :NUM_CLASSES]
    pre = x @ w1 + params["b1"]
    if bf16_act:
        pre = pre.astype(jnp.bfloat16).astype(jnp.float32)
    h = jnp.tanh(pre)
    h = h.astype(jnp.bfloat16).astype(jnp.float32)
    logits = h @ w2 + b2
    logp = jax.nn.log_softmax(logits, axis=-1)
    onehot = jax.nn.one_hot(labels.reshape(-1), NUM_CLASSES, dtype=jnp.float32)
    q = (1.0 - LABEL_SMOOTHING) * onehot + LABEL_SMOOTHING / NUM_CLASSES
    loss = jnp.mean(-jnp.sum(q * logp, axis=-1))
    return loss, logits


if __name__ == "__main__":
    key = jax.random.PRNGKey(0)
    k_feat, k_lab, k_par = jax.random.split(key, 3)

    batch_pairs = 2      # number of code-pair examples
    block_size = 8       # seq length (args.block_size)
    hidden = 32          # config.hidden_size

    # Synthetic encoder output: input_ids (B, 2, block_size) -> view(-1, block_size)
    # -> encoder -> (2*B, block_size, hidden)
    features = jax.random.normal(
        k_feat, (2 * batch_pairs, block_size, hidden), jnp.float32
    )
    labels = jax.random.randint(k_lab, (batch_pairs, 1), 0, NUM_CLASSES, jnp.int32)
    params = init_params(k_par, hidden)

    loss, prob = jax.jit(model_forward)(features, labels, params)
    jax.block_until_ready((loss, prob))

    ref_loss, ref_logits = _reference(
        features, labels, params, bf16_act=_bf16_activations()
    )
    assert prob.shape == (batch_pairs, NUM_CLASSES)
    assert loss.shape == ()
    assert jnp.allclose(prob, ref_logits, atol=5e-3, rtol=5e-3)
    assert jnp.allclose(loss, ref_loss, atol=5e-3, rtol=5e-3)
    print("KERNEL_OK")
</pallas_src>

<mosaic_0001>
module attributes {stable_mosaic.version = 11 : i64} {
  func.func @_head_loss_kernel(%arg0: i32, %arg1: memref<16x64xbf16, #tpu.memory_space<vmem>>, %arg2: memref<16x1xi32, #tpu.memory_space<vmem>>, %arg3: memref<64x32xbf16, #tpu.memory_space<vmem>>, %arg4: memref<1x32xf32, #tpu.memory_space<vmem>>, %arg5: memref<32x128xbf16, #tpu.memory_space<vmem>>, %arg6: memref<1x128xf32, #tpu.memory_space<vmem>>, %arg7: memref<16x128xf32, #tpu.memory_space<vmem>>) attributes {dimension_semantics = [#tpu.dimension_semantics<parallel>], iteration_bounds = array<i64: 1>, scalar_prefetch = 0 : i64, scratch_operands = 0 : i64, tpu.core_type = #tpu.core_type<tc>, window_params = [{transform_indices = @transform_0, window_bounds = array<i64: 16, 64>}, {transform_indices = @transform_1, window_bounds = array<i64: 16, 1>}, {pipeline_mode = #tpu.pipeline_mode<synchronous>, transform_indices = @transform_2, window_bounds = array<i64: 64, 32>}, {pipeline_mode = #tpu.pipeline_mode<synchronous>, transform_indices = @transform_3, window_bounds = array<i64: 1, 32>}, {pipeline_mode = #tpu.pipeline_mode<synchronous>, transform_indices = @transform_4, window_bounds = array<i64: 32, 128>}, {pipeline_mode = #tpu.pipeline_mode<synchronous>, transform_indices = @transform_5, window_bounds = array<i64: 1, 128>}, {transform_indices = @transform_6, window_bounds = array<i64: 16, 128>}]} {
    %c0 = arith.constant 0 : index
    %c0_0 = arith.constant 0 : index
    %0 = vector.load %arg1[%c0, %c0_0] : memref<16x64xbf16, #tpu.memory_space<vmem>>, vector<16x64xbf16>
    %c0_1 = arith.constant 0 : index
    %c0_2 = arith.constant 0 : index
    %1 = vector.load %arg3[%c0_1, %c0_2] : memref<64x32xbf16, #tpu.memory_space<vmem>>, vector<64x32xbf16>
    %cst = arith.constant dense<0.000000e+00> : vector<16x32xf32>
    %2 = tpu.matmul %0, %1, %cst {dimension_numbers = #tpu.dot_dimension_numbers<[1], [0], [0], [1], [0, 0, 1, 1], [], []>} : vector<16x64xbf16>, vector<64x32xbf16>, vector<16x32xf32> -> vector<16x32xf32>
    %c0_3 = arith.constant 0 : index
    %c0_4 = arith.constant 0 : index
    %3 = vector.load %arg4[%c0_3, %c0_4] : memref<1x32xf32, #tpu.memory_space<vmem>>, vector<1x32xf32>
    %4 = vector.broadcast %3 : vector<1x32xf32> to vector<16x32xf32>
    %5 = arith.addf %2, %4 : vector<16x32xf32>
    %6 = math.tanh %5 : vector<16x32xf32>
    %7 = arith.truncf %6 : vector<16x32xf32> to vector<16x32xbf16>
    %c0_5 = arith.constant 0 : index
    %c0_6 = arith.constant 0 : index
    %8 = vector.load %arg5[%c0_5, %c0_6] : memref<32x128xbf16, #tpu.memory_space<vmem>>, vector<32x128xbf16>
    %cst_7 = arith.constant dense<0.000000e+00> : vector<16x128xf32>
    %9 = tpu.matmul %7, %8, %cst_7 {dimension_numbers = #tpu.dot_dimension_numbers<[1], [0], [0], [1], [0, 0, 1, 1], [], []>} : vector<16x32xbf16>, vector<32x128xbf16>, vector<16x128xf32> -> vector<16x128xf32>
    %c0_8 = arith.constant 0 : index
    %c0_9 = arith.constant 0 : index
    %10 = vector.load %arg6[%c0_8, %c0_9] : memref<1x128xf32, #tpu.memory_space<vmem>>, vector<1x128xf32>
    %11 = vector.broadcast %10 : vector<1x128xf32> to vector<16x128xf32>
    %12 = arith.addf %9, %11 : vector<16x128xf32>
    %13 = tpu.iota {dimensions = array<i32: 1>} : vector<16x128xi32>
    %c2_i32 = arith.constant 2 : i32
    %14 = vector.broadcast %c2_i32 : i32 to vector<16x128xi32>
    %15 = arith.cmpi slt, %13, %14 : vector<16x128xi32>
    %c1_i32 = arith.constant 1 : i32
    %16 = tpu.dynamic_rotate %12 by %c1_i32 dim 1 : vector<16x128xf32>, i32 -> vector<16x128xf32>
    %c127_i32 = arith.constant 127 : i32
    %17 = tpu.dynamic_rotate %12 by %c127_i32 dim 1 : vector<16x128xf32>, i32 -> vector<16x128xf32>
    %18 = arith.addf %16, %17 : vector<16x128xf32>
    %19 = arith.maximumf %12, %18 : vector<16x128xf32>
    %20 = arith.subf %12, %18 : vector<16x128xf32>
    %21 = math.absf %20 : vector<16x128xf32>
    %cst_10 = arith.constant 0.000000e+00 : f32
    %22 = vector.broadcast %cst_10 : f32 to vector<16x128xf32>
    %23 = arith.subf %22, %21 : vector<16x128xf32>
    %24 = math.exp %23 : vector<16x128xf32>
    %cst_11 = arith.constant 1.000000e+00 : f32
    %25 = vector.broadcast %cst_11 : f32 to vector<16x128xf32>
    %26 = arith.addf %25, %24 : vector<16x128xf32>
    %27 = math.log %26 : vector<16x128xf32>
    %28 = arith.addf %19, %27 : vector<16x128xf32>
    %29 = arith.subf %12, %28 : vector<16x128xf32>
    %c0_12 = arith.constant 0 : index
    %c0_13 = arith.constant 0 : index
    %30 = vector.load %arg2[%c0_12, %c0_13] : memref<16x1xi32, #tpu.memory_space<vmem>>, vector<16x1xi32>
    %31 = vector.broadcast %30 : vector<16x1xi32> to vector<16x128xi32>
    %32 = arith.cmpi eq, %13, %31 : vector<16x128xi32>
    %33 = arith.extui %32 : vector<16x128xi1> to vector<16x128xi32>
    %34 = arith.sitofp %33 : vector<16x128xi32> to vector<16x128xf32>
    %cst_14 = arith.constant 1.000000e+00 : f32
    %cst_15 = arith.constant 1.000000e-01 : f32
    %35 = arith.subf %cst_14, %cst_15 : f32
    %36 = vector.broadcast %35 : f32 to vector<16x128xf32>
    %37 = arith.mulf %36, %34 : vector<16x128xf32>
    %cst_16 = arith.constant 1.000000e-01 : f32
    %cst_17 = arith.constant 2.000000e+00 : f32
    %38 = arith.divf %cst_16, %cst_17 : f32
    %39 = vector.broadcast %38 : f32 to vector<16x128xf32>
    %40 = arith.addf %37, %39 : vector<16x128xf32>
    %cst_18 = arith.constant 0.000000e+00 : f32
    %41 = vector.broadcast %cst_18 : f32 to vector<16x128xf32>
    %42 = arith.select %15, %40, %41 : vector<16x128xi1>, vector<16x128xf32>
    %43 = arith.mulf %42, %29 : vector<16x128xf32>
    %cst_19 = arith.constant dense<0.000000e+00> : vector<16xf32>
    %44 = vector.multi_reduction <add>, %43, %cst_19 [1] : vector<16x128xf32> to vector<16xf32>
    %45 = vector.shape_cast %44 : vector<16xf32> to vector<16x1xf32>
    %cst_20 = arith.constant 0.000000e+00 : f32
    %46 = vector.broadcast %cst_20 : f32 to vector<16x1xf32>
    %47 = arith.subf %46, %45 : vector<16x1xf32>
    %c2_i32_21 = arith.constant 2 : i32
    %48 = vector.broadcast %c2_i32_21 : i32 to vector<16x128xi32>
    %49 = arith.cmpi eq, %13, %48 : vector<16x128xi32>
    %cst_22 = arith.constant 0.000000e+00 : f32
    %50 = vector.shape_cast %47 : vector<16x1xf32> to vector<16x1xf32>
    %51 = vector.broadcast %50 : vector<16x1xf32> to vector<16x128xf32>
    %52 = vector.broadcast %cst_22 : f32 to vector<16x128xf32>
    %53 = arith.select %49, %51, %52 : vector<16x128xi1>, vector<16x128xf32>
    %54 = arith.select %15, %12, %53 : vector<16x128xi1>, vector<16x128xf32>
    %c0_23 = arith.constant 0 : index
    %c0_24 = arith.constant 0 : index
    %55 = vector.load %arg7[%c0_23, %c0_24] : memref<16x128xf32, #tpu.memory_space<vmem>>, vector<16x128xf32>
    tpu.vector_store %arg7[%c0_23, %c0_24], %54 {strides = array<i32>} : memref<16x128xf32, #tpu.memory_space<vmem>>, vector<16x128xf32>,
    return
  }
  func.func @transform_0(%arg0: i32) -> (i32, i32) {
    %c0_i32 = arith.constant 0 : i32
    %c0_i32_0 = arith.constant 0 : i32
    return %arg0, %c0_i32 : i32, i32
  }
  func.func @transform_1(%arg0: i32) -> (i32, i32) {
    %c0_i32 = arith.constant 0 : i32
    %c0_i32_0 = arith.constant 0 : i32
    return %arg0, %c0_i32 : i32, i32
  }
  func.func @transform_2(%arg0: i32) -> (i32, i32) {
    %c0_i32 = arith.constant 0 : i32
    %c0_i32_0 = arith.constant 0 : i32
    %c0_i32_1 = arith.constant 0 : i32
    return %c0_i32, %c0_i32_0 : i32, i32
  }
  func.func @transform_3(%arg0: i32) -> (i32, i32) {
    %c0_i32 = arith.constant 0 : i32
    %c0_i32_0 = arith.constant 0 : i32
    %c0_i32_1 = arith.constant 0 : i32
    return %c0_i32, %c0_i32_0 : i32, i32
  }
  func.func @transform_4(%arg0: i32) -> (i32, i32) {
    %c0_i32 = arith.constant 0 : i32
    %c0_i32_0 = arith.constant 0 : i32
    %c0_i32_1 = arith.constant 0 : i32
    return %c0_i32, %c0_i32_0 : i32, i32
  }
  func.func @transform_5(%arg0: i32) -> (i32, i32) {
    %c0_i32 = arith.constant 0 : i32
    %c0_i32_0 = arith.constant 0 : i32
    %c0_i32_1 = arith.constant 0 : i32
    return %c0_i32, %c0_i32_0 : i32, i32
  }
  func.func @transform_6(%arg0: i32) -> (i32, i32) {
    %c0_i32 = arith.constant 0 : i32
    %c0_i32_0 = arith.constant 0 : i32
    return %arg0, %c0_i32 : i32, i32
  }
}

</mosaic_0001>

<llo_original>
// kernel: model_forward.1
$region0: #{model_forward.1}
  #allocation0 [shape = 'u32[]', space=smem, size = 0x4, offset = 0x4, fixed_abs, tag = 'smem constant byte address 0x4 - core index']
  #allocation1 [shape = 'u32[144,128]{1,0:T(1,128)}', space=vmem, size = 0x12000, scoped, tag = 'internal scratch']
  %s0 = inlined_call_operand.vmem [shape: bf16[16,64], index: 0, kind: input, shape index: {}]
  %s1 = inlined_call_operand.vmem [shape: s32[16,1], index: 1, kind: input, shape index: {}]
  %s2 = inlined_call_operand.vmem [shape: bf16[64,32], index: 2, kind: input, shape index: {}]
  %s3 = inlined_call_operand.vmem [shape: f32[1,32], index: 3, kind: input, shape index: {}]
  %s4 = inlined_call_operand.vmem [shape: bf16[32,128], index: 4, kind: input, shape index: {}]
  %s5 = inlined_call_operand.vmem [shape: f32[1,128], index: 5, kind: input, shape index: {}]
  %s6 = inlined_call_operand.vmem [shape: f32[16,128], index: 6, kind: output, shape index: {}]
  %s7 = sld [smem:[#allocation0]]
  $region34: #{model_forward.1} parent=0
    _
  %s9 = ssub.s32 1, %s7
  %s10 = scalar_select 0, %s9, %s7
  // Predicated region
  $region2: #{model_forward.1} parent=0 // pred_check
    _
  $region3: #{model_forward.1} parent=0 // pred_check_branch
    %12 = sbr.rel (0) target = $region5
  $region4: #{model_forward.1} parent=0 // pred_region
    _
  $region5: #{model_forward.1} parent=0 // pred_fallthru
    _
  // Predicated region
  $region6: #{model_forward.1} parent=0 // pred_check
    _
  $region7: #{model_forward.1} parent=0 // pred_check_branch
    %14 = sbr.rel (0) target = $region9
  $region8: #{model_forward.1} parent=0 // pred_region
    _
  $region9: #{model_forward.1} parent=0 // pred_fallthru
    _
  // Predicated region
  $region10: #{model_forward.1} parent=0 // pred_check
    _
  $region11: #{model_forward.1} parent=0 // pred_check_branch
    %16 = sbr.rel (0) target = $region13
  $region12: #{model_forward.1} parent=0 // pred_region
    _
  $region13: #{model_forward.1} parent=0 // pred_fallthru
    _
  // Predicated region
  $region14: #{model_forward.1} parent=0 // pred_check
    _
  $region15: #{model_forward.1} parent=0 // pred_check_branch
    %18 = sbr.rel (0) target = $region17
  $region16: #{model_forward.1} parent=0 // pred_region
    _
  $region17: #{model_forward.1} parent=0 // pred_fallthru
    _
  // Predicated region
  $region18: #{model_forward.1} parent=0 // pred_check
    _
  $region19: #{model_forward.1} parent=0 // pred_check_branch
    %20 = sbr.rel (0) target = $region21
  $region20: #{model_forward.1} parent=0 // pred_region
    _
  $region21: #{model_forward.1} parent=0 // pred_fallthru
    _
  // Predicated region
  $region22: #{model_forward.1} parent=0 // pred_check
    _
  $region23: #{model_forward.1} parent=0 // pred_check_branch
    %22 = sbr.rel (0) target = $region25
  $region24: #{model_forward.1} parent=0 // pred_region
    _
  $region25: #{model_forward.1} parent=0 // pred_fallthru
    _
  %v24 = vld [vmem:[%s0] sm:$0xf]
  %v25 = vld [vmem:[%s0 + $0x4] sm:$0xf]
  %v26 = vld [vmem:[%s2] sm:$0xf]
  %v27 = vld [vmem:[%s2 + $0x4] sm:$0xf]
  %v28 = vld [vmem:[%s2 + $0x8] sm:$0xf]
  %v29 = vld [vmem:[%s2 + $0xc] sm:$0xf]
  %v30 = vld [vmem:[%s2 + $0x10] sm:$0xf]
  %v31 = vld [vmem:[%s2 + $0x14] sm:$0xf]
  %v32 = vld [vmem:[%s2 + $0x18] sm:$0xf]
  %v33 = vld [vmem:[%s2 + $0x1c] sm:$0xf]
  %v34 = vld [vmem:[%s3] sm:$0x1]
  %v36 = vlaneseq
  %v37 = vshrl.u32 %v36, 7
  %v38 = vsub.s32 0, %v37
  %v39 = vrot.slane %v34, %v38
  %v43 = vunpack.c.l.b16 %v24
  %v44 = vunpack.c.l.b16 %v25
  %v45 = vpack.c.b16 %v44, %v43
  %v54 = vunpack.c.l.b16 %v26
  %v55 = vunpack.c.l.b16 %v27
  %v56 = vunpack.c.l.b16 %v28
  %v57 = vunpack.c.l.b16 %v29
  %v58 = vunpack.c.l.b16 %v30
  %v59 = vunpack.c.l.b16 %v31
  %v60 = vunpack.c.l.b16 %v32
  %v61 = vunpack.c.l.b16 %v33
  %v62 = vpack.c.b16 %v55, %v54
  %v63 = vpack.c.b16 %v57, %v56
  %v64 = vpack.c.b16 %v59, %v58
  %v65 = vpack.c.b16 %v61, %v60
  %vm70 = vcmask 523264
  %v72 = vsel %vm70, %v45, 0
  %74 = vmatprep.subr.bf16.mxu0 0
  %75 = vmatpush1.bf16.msra.mxu0 %v62
  %76 = vmatprep.subr.bf16.mxu0 0
  %77 = vmatpush1.bf16.msra.mxu0 %v63
  %78 = vmatprep.subr.bf16.mxu0 0
  %79 = vmatpush1.bf16.msra.mxu0 %v64
  %80 = vmatprep.subr.bf16.mxu0 0
  %81 = vmatpush1.bf16.msra.mxu0 %v65
  %82 = vmatprep.subr.bf16.mxu0 0
  %83 = vmatpush1.bf16.msra.mxu0 0
  %84 = vmatprep.subr.bf16.mxu0 0
  %85 = vmatpush1.bf16.msra.mxu0 0
  %86 = vmatprep.subr.bf16.mxu0 0
  %87 = vmatpush1.bf16.msra.mxu0 0
  %88 = vmatprep.subr.bf16.mxu0 0
  %89 = vmatpush1.bf16.msra.mxu0 0
  %90 = vmatprep.subr.bf16.mxu0 0
  %91 = vmatpush1.bf16.msra.mxu0 0
  %92 = vmatprep.subr.bf16.mxu0 0
  %93 = vmatpush1.bf16.msra.mxu0 0
  %94 = vmatprep.subr.bf16.mxu0 0
  %95 = vmatpush1.bf16.msra.mxu0 0
  %96 = vmatprep.subr.bf16.mxu0 0
  %97 = vmatpush1.bf16.msra.mxu0 0
  %98 = vmatprep.subr.bf16.mxu0 0
  %99 = vmatpush1.bf16.msra.mxu0 0
  %100 = vmatprep.subr.bf16.mxu0 0
  %101 = vmatpush1.bf16.msra.mxu0 0
  %102 = vmatprep.subr.bf16.mxu0 0
  %103 = vmatpush1.bf16.msra.mxu0 0
  %104 = vmatprep.subr.bf16.mxu0 0
  %105 = vmatpush1.bf16.msra.mxu0 0
  %106 = vmatprep.mubr.bf16.mxu0 0
  %107 = vmatmul.mubr.bf16.gmra.mrb[0].mxu0 %v72
  %v108 = vpop.f32.mrb[0].mxu0
  %v109 = vadd.f32 %v39, %v108
  %v110 = vpop.f32.mrb[0].mxu0
  %v111 = vpop.f32.mrb[0].mxu0
  %v112 = vadd.f32 %v39, %v111
  %v113 = vpop.f32.mrb[0].mxu0
  %114 = vdwg.mxu0
  %v115 = vtanh.pop %v109
  %v116 = vtanh.pop %v112
  %v117 = vpack.c.bf16 %v116, %v115
  %v118 = vld [vmem:[%s4] sm:$0xf]
  %v119 = vld [vmem:[%s4 + $0x4] sm:$0xf]
  %v120 = vld [vmem:[%s4 + $0x8] sm:$0xf]
  %v121 = vld [vmem:[%s4 + $0xc] sm:$0xf]
  %v122 = vld [vmem:[%s5] sm:$0x1]
  %v124 = vlaneseq
  %v125 = vshrl.u32 %v124, 7
  %v126 = vsub.s32 0, %v125
  %v127 = vrot.slane %v122, %v126
  %v133 = vunpack.c.l.b16 %v118
  %v134 = vunpack.c.l.b16 %v119
  %v135 = vunpack.c.l.b16 %v120
  %v136 = vunpack.c.l.b16 %v121
  %v137 = vpack.c.b16 %v134, %v133
  %v138 = vpack.c.b16 %v136, %v135
  %vm141 = vcmask 261120
  %v143 = vsel %vm141, %v117, 0
  %145 = vmatprep.subr.bf16.mxu0 0
  %146 = vmatpush1.bf16.msra.mxu0 %v137
  %147 = vmatprep.subr.bf16.mxu0 0
  %148 = vmatpush1.bf16.msra.mxu0 %v138
  %149 = vmatprep.subr.bf16.mxu0 0
  %150 = vmatpush1.bf16.msra.mxu0 0
  %151 = vmatprep.subr.bf16.mxu0 0
  %152 = vmatpush1.bf16.msra.mxu0 0
  %153 = vmatprep.subr.bf16.mxu0 0
  %154 = vmatpush1.bf16.msra.mxu0 0
  %155 = vmatprep.subr.bf16.mxu0 0
  %156 = vmatpush1.bf16.msra.mxu0 0
  %157 = vmatprep.subr.bf16.mxu0 0
  %158 = vmatpush1.bf16.msra.mxu0 0
  %159 = vmatprep.subr.bf16.mxu0 0
  %160 = vmatpush1.bf16.msra.mxu0 0
  %161 = vmatprep.subr.bf16.mxu0 0
  %162 = vmatpush1.bf16.msra.mxu0 0
  %163 = vmatprep.subr.bf16.mxu0 0
  %164 = vmatpush1.bf16.msra.mxu0 0
  %165 = vmatprep.subr.bf16.mxu0 0
  %166 = vmatpush1.bf16.msra.mxu0 0
  %167 = vmatprep.subr.bf16.mxu0 0
  %168 = vmatpush1.bf16.msra.mxu0 0
  %169 = vmatprep.subr.bf16.mxu0 0
  %170 = vmatpush1.bf16.msra.mxu0 0
  %171 = vmatprep.subr.bf16.mxu0 0
  %172 = vmatpush1.bf16.msra.mxu0 0
  %173 = vmatprep.subr.bf16.mxu0 0
  %174 = vmatpush1.bf16.msra.mxu0 0
  %175 = vmatprep.subr.bf16.mxu0 0
  %176 = vmatpush1.bf16.msra.mxu0 0
  %177 = vmatprep.mubr.bf16.mxu0 0
  %178 = vmatmul.mubr.bf16.gmra.mrb[0].mxu0 %v143
  %v179 = vpop.f32.mrb[0].mxu0
  %v180 = vadd.f32 %v127, %v179
  %v181 = vpop.f32.mrb[0].mxu0
  %v182 = vpop.f32.mrb[0].mxu0
  %v183 = vadd.f32 %v127, %v182
  %v184 = vpop.f32.mrb[0].mxu0
  %185 = vdwg.mxu0
  %v186 = vlaneseq
  %v187 = vand.u32 %v186, 127
  %vm188 = vcmp.lt.s32.totalorder %v187, 2
  %189 = vrot.lane.b32.xlu0 %v180, 1
  %v190 = vpop.permute.xlu0 %189
  %191 = vrot.lane.b32.xlu0 %v183, 1
  %v192 = vpop.permute.xlu0 %191
  %193 = vrot.lane.b32.xlu0 %v180, 127
  %v194 = vpop.permute.xlu0 %193
  %195 = vrot.lane.b32.xlu0 %v183, 127
  %v196 = vpop.permute.xlu0 %195
  %v197 = vadd.f32 %v190, %v194
  %v198 = vadd.f32 %v192, %v196
  %v199 = vmax.f32 %v180, %v197
  %v200 = vmax.f32 %v183, %v198
  %v201 = vsub.f32 %v180, %v197
  %v202 = vsub.f32 %v183, %v198
  %v203 = vand.u32 2147483647, %v201
  %v204 = vand.u32 2147483647, %v202
  %v205 = vsub.f32 0.0, %v203
  %v206 = vsub.f32 0.0, %v204
  %v207 = vmul.f32 %v205, 1.442695
  %v208 = vpow.pop %v207
  %v209 = vmul.f32 %v206, 1.442695
  %v210 = vpow.pop %v209
  %v211 = vadd.f32 %v208, 1.0
  %v212 = vadd.f32 %v210, 1.0
  %v213 = vlog2.pop %v211
  %v214 = vmul.f32 %v213, 0.6931472
  %v215 = vlog2.pop %v212
  %v216 = vmul.f32 %v215, 0.6931472
  %v217 = vadd.f32 %v199, %v214
  %v218 = vadd.f32 %v200, %v216
  %v219 = vsub.f32 %v180, %v217
  %v220 = vsub.f32 %v183, %v218
  %v221 = vld [vmem:[%s1] sm:$0xff]
  %v222 = vld [vmem:[%s1 + $0x8] sm:$0xff]
  %223 = vset.pattern.permute.xlu0 0
  %224 = vperm.xlu0 %223, %v221
  %v225 = vpop.permute.xlu0 %224
  %226 = vset.pattern.permute.xlu0 0
  %227 = vperm.xlu0 %226, %v222
  %v228 = vpop.permute.xlu0 %227
  %vm229 = vcmp.eq.s32.totalorder %v187, %v225
  %vm230 = vcmp.eq.s32.totalorder %v187, %v228
  %v231 = vsel %vm229, 1, 0
  %v232 = vsel %vm230, 1, 0
  %v233 = vcvt.s32.f32 %v231
  %v234 = vcvt.s32.f32 %v232
  %v235 = vmul.f32 %v233, 0.9
  %v236 = vmul.f32 %v234, 0.9
  %v237 = vadd.f32 %v235, 0.05
  %v238 = vadd.f32 %v236, 0.05
  %v239 = vsel %vm188, %v237, 0.0
  %v240 = vsel %vm188, %v238, 0.0
  %v241 = vmul.f32 %v239, %v219
  %v242 = vmul.f32 %v240, %v220
  %243 = vadd.xlane.f32.xlu0 %v241
  %v244 = vpop.xlane.xlu0 %243
  %245 = vadd.xlane.f32.xlu0 %v242
  %v246 = vpop.xlane.xlu0 %245
  %v247 = vsub.f32 0.0, %v244
  %v248 = vsub.f32 0.0, %v246
  %vm249 = vcmp.eq.s32.totalorder %v187, 2
  %v250 = vsel %vm249, %v247, 0.0
  %v251 = vsel %vm249, %v248, 0.0
  %v252 = vsel %vm188, %v180, %v250
  %v253 = vsel %vm188, %v183, %v251
  %254 = vst [vmem:[%s6] sm:$0xff] %v252
  %255 = vst [vmem:[%s6 + $0x8] sm:$0xff] %v253
  // Predicated region
  $region26: #{model_forward.1} parent=0 // pred_check
    _
  $region27: #{model_forward.1} parent=0 // pred_check_branch
    %257 = sbr.rel (0) target = $region29
  $region28: #{model_forward.1} parent=0 // pred_region
    _
  $region29: #{model_forward.1} parent=0 // pred_fallthru
    _
  // Predicated region
  $region30: #{model_forward.1} parent=0 // pred_check
    _
  $region31: #{model_forward.1} parent=0 // pred_check_branch
    %259 = sbr.rel (0) target = $region33
  $region32: #{model_forward.1} parent=0 // pred_region
    _
  $region33: #{model_forward.1} parent=0 // pred_fallthru
    _

</llo_original>
